<compile_context>
chip_gen: v7x
topology: tpu7x:2x2x1
jax: 0.10.0
libtpu: 0.0.40
codegen_flags: <defaults>
</compile_context>

<pallas_src>
import functools

import jax
import jax.numpy as jnp
import numpy as np
from jax import lax
from jax.experimental import pallas as pl
from jax.experimental.pallas import tpu as pltpu


def _attention_kernel(x_ref, wt_ref, wpg_ref, wo_ref, gamma_ref, out_ref, kv_ref):
    """Grid = (batch n, query tile q).

    x_ref   : (1, C, WH)         window-permuted input slab (resident across q)
    wt_ref  : (C8, C)            theta 1x1 conv weight
    wpg_ref : (C8+C2, C)         stacked [phi; g] 1x1 conv weights
    wo_ref  : (C, C2)            o 1x1 conv weight
    gamma   : (1,) f32 in SMEM
    out_ref : (1, C, TQ)         output query tile (window-permuted order)
    kv_ref  : (C8+C2, WH4) bf16  scratch: pooled [phi; g], resident per batch
    """
    C8 = wt_ref.shape[0]
    WH4 = kv_ref.shape[1]
    TQ = out_ref.shape[2]
    q = pl.program_id(1)

    # ---- pooled phi/g: computed once per batch element (q == 0) -------------
    @pl.when(q == 0)
    def _():
        wpg = wpg_ref[...].astype(jnp.bfloat16)                  # (C8+C2, C)

        # maxpool2x2(conv1x1(x)) == elementwise max over the 4 window offsets
        # of conv1x1 applied to each offset slab; the slabs are contiguous in
        # the window-permuted layout so this is 4 matmuls + 3 maxes.
        def offset_conv(k):
            xk = x_ref[0, :, pl.ds(k * WH4, WH4)].astype(jnp.bfloat16)
            return jnp.dot(wpg, xk, preferred_element_type=jnp.float32)

        r = offset_conv(0)
        for k in range(1, 4):
            r = jnp.maximum(r, offset_conv(k))
        kv_ref[...] = r.astype(jnp.bfloat16)

    # ---- per-query-tile attention -------------------------------------------
    qs = pl.multiple_of(q * TQ, TQ)
    xq = x_ref[0, :, pl.ds(qs, TQ)]                              # (C, TQ) f32
    theta = jnp.dot(wt_ref[...].astype(jnp.bfloat16),
                    xq.astype(jnp.bfloat16),
                    preferred_element_type=jnp.float32)          # (C8, TQ)

    kv = kv_ref[...]                                             # (C8+C2, WH4) bf16
    phi = kv[:C8]                                                # (C8, WH4)
    g = kv[C8:]                                                  # (C2, WH4)

    # scores: contract the channel axis directly (no theta.T materialization).
    # NOTE: for tiny production C (C//8 < 8) this contraction under-fills the
    # MXU; with realistic SAGAN channel counts (C >= 128) it is well filled.
    s = lax.dot_general(theta.astype(jnp.bfloat16), phi,
                        (((0,), (0,)), ((), ())),
                        preferred_element_type=jnp.float32)      # (TQ, WH4)
    s = s - jnp.max(s, axis=-1, keepdims=True)
    p = jnp.exp(s)
    inv = pl.reciprocal(jnp.sum(p, axis=-1, keepdims=True), approx=True)
    beta = (p * inv).astype(jnp.bfloat16)                        # (TQ, WH4)

    # attend: contract the pooled-key axis of both (no beta.T materialization)
    o_in = lax.dot_general(g, beta, (((1,), (1,)), ((), ())),
                           preferred_element_type=jnp.float32)   # (C2, TQ)

    o = jnp.dot(wo_ref[...], o_in, preferred_element_type=jnp.float32)  # (C, TQ)
    out_ref[0] = gamma_ref[0] * o + xq


@functools.partial(jax.jit, static_argnames=("tq",))
def attention_pallas(x, wt, wp, wg, wo, gamma, *, tq=None):
    """x: (N, C, W, H) float32.  Returns (N, C, W, H)."""
    N, C, W, H = x.shape
    assert C % 8 == 0 and W % 2 == 0 and H % 2 == 0
    WH = W * H
    WH4 = WH // 4
    C8, C2 = C // 8, C // 2

    # Query-tile size: caps live score state at (tq, WH/4).  512 keeps v7x's
    # 64 MiB VMEM comfortable at large resolutions; larger is fine on v5e/v6e.
    if tq is None:
        tq = WH if WH <= 512 else 512
    assert WH % tq == 0
    nq = WH // tq

    # Window-permuted spatial order: (dw, dh, w2, h2).  The kernel then reads x
    # exactly once per batch element and does the pooled convs as a max over 4
    # contiguous chunks.  The output is un-permuted below.
    # TODO(synk): the permute / un-permute are two extra XLA transpose passes
    # over x/out; they could be folded into neighboring ops by the caller.
    x_perm = (x.reshape(N, C, W // 2, 2, H // 2, 2)
               .transpose(0, 1, 3, 5, 2, 4)
               .reshape(N, C, WH))
    w_pg = jnp.concatenate([wp, wg], axis=0)                     # (C8+C2, C)
    gamma_arr = jnp.asarray(gamma, jnp.float32).reshape(1)

    # Explicit scoped-VMEM budget: resident x slab (double-buffered), output
    # tiles, score/softmax intermediates, phi/g scratch, weights + headroom.
    est = 4 * (2 * C * WH + 2 * C * tq + 4 * tq * WH4 + 4 * C * (C8 + C2))
    est += 2 * (C8 + C2) * WH4
    vmem_limit = int(min(56 * 2**20, max(24 * 2**20, 2 * est + (8 << 20))))

    out_perm = pl.pallas_call(
        _attention_kernel,
        out_shape=jax.ShapeDtypeStruct((N, C, WH), jnp.float32),
        grid=(N, nq),
        in_specs=[
            pl.BlockSpec((1, C, WH), lambda n, q: (n, 0, 0)),    # resident per n
            pl.BlockSpec((C8, C), lambda n, q: (0, 0)),
            pl.BlockSpec((C8 + C2, C), lambda n, q: (0, 0)),
            pl.BlockSpec((C, C2), lambda n, q: (0, 0)),
            pl.BlockSpec(memory_space=pltpu.MemorySpace.SMEM),
        ],
        out_specs=pl.BlockSpec((1, C, tq), lambda n, q: (n, 0, q)),
        scratch_shapes=[pltpu.VMEM((C8 + C2, WH4), jnp.bfloat16)],
        compiler_params=pltpu.CompilerParams(
            dimension_semantics=("parallel", "arbitrary"),
            vmem_limit_bytes=vmem_limit),
    )(x_perm, wt, w_pg, wo, gamma_arr)

    out = (out_perm.reshape(N, C, 2, 2, W // 2, H // 2)
                   .transpose(0, 1, 4, 2, 5, 3)
                   .reshape(N, C, W, H))
    return out


def attention_reference(x, wt, wp, wg, wo, gamma):
    """Pure-JAX reference mirroring the PyTorch forward (f32 throughout)."""
    N, C, W, H = x.shape
    xf = x.reshape(N, C, W * H)
    theta = jnp.einsum('oc,ncp->nop', wt, xf)                           # (N, C/8, WH)
    phi_full = jnp.einsum('oc,ncp->nop', wp, xf).reshape(N, C // 8, W, H)
    phi = (phi_full.reshape(N, C // 8, W // 2, 2, H // 2, 2)
           .max(axis=(3, 5)).reshape(N, C // 8, -1))                    # (N, C/8, WH/4)
    g_full = jnp.einsum('oc,ncp->nop', wg, xf).reshape(N, C // 2, W, H)
    g = (g_full.reshape(N, C // 2, W // 2, 2, H // 2, 2)
         .max(axis=(3, 5)).reshape(N, C // 2, -1))                      # (N, C/2, WH/4)
    s = jnp.einsum('ncp,ncq->npq', theta, phi)                          # (N, WH, WH/4)
    beta = jax.nn.softmax(s, axis=-1)
    o_in = jnp.einsum('ncq,npq->ncp', g, beta)                          # (N, C/2, WH)
    o = jnp.einsum('oc,ncp->nop', wo, o_in)                             # (N, C, WH)
    return (gamma * o + xf).reshape(N, C, W, H)


if __name__ == "__main__":
    # Small shapes consistent with the module: C must be divisible by 8.
    N, C, W, H = 2, 16, 16, 16

    key = jax.random.PRNGKey(0)
    kx, k1, k2, k3, k4 = jax.random.split(key, 5)
    x = jax.random.normal(kx, (N, C, W, H), jnp.float32)

    # Deterministic synthetic parameters (shapes from Attention.__init__).
    wt = 0.1 * jax.random.normal(k1, (C // 8, C), jnp.float32)   # theta.weight (1x1)
    wp = 0.1 * jax.random.normal(k2, (C // 8, C), jnp.float32)   # phi.weight   (1x1)
    wg = 0.1 * jax.random.normal(k3, (C // 2, C), jnp.float32)   # g.weight     (1x1)
    wo = 0.1 * jax.random.normal(k4, (C, C // 2), jnp.float32)   # o.weight     (1x1)
    # nn.Parameter(torch.tensor(0.0)) would make the output == x; use a nonzero
    # gamma here so the attention path is actually exercised/verified.
    gamma = jnp.float32(0.5)

    # tq=128 on the small demo forces multiple query tiles so the pl.when /
    # resident-scratch path is exercised.
    out = attention_pallas(x, wt, wp, wg, wo, gamma, tq=128)
    out = jax.block_until_ready(out)

    ref = attention_reference(x, wt, wp, wg, wo, gamma)
    # bf16 MXU operands + approx reciprocal set the comparison tolerance.
    np.testing.assert_allclose(np.asarray(out), np.asarray(ref),
                               rtol=2e-2, atol=2e-2)

    print("KERNEL_OK")
</pallas_src>

<mosaic_0001>
module attributes {stable_mosaic.version = 11 : i64} {
  func.func @_attention_kernel(%arg0: i32, %arg1: i32, %arg2: memref<1x16x256xf32, #tpu.memory_space<vmem>>, %arg3: memref<2x16xf32, #tpu.memory_space<vmem>>, %arg4: memref<10x16xf32, #tpu.memory_space<vmem>>, %arg5: memref<16x8xf32, #tpu.memory_space<vmem>>, %arg6: memref<1xf32, #tpu.memory_space<smem>>, %arg7: memref<1x16x128xf32, #tpu.memory_space<vmem>>, %arg8: memref<10x64xbf16, #tpu.memory_space<vmem>>) attributes {dimension_semantics = [#tpu.dimension_semantics<parallel>, #tpu.dimension_semantics<arbitrary>], iteration_bounds = array<i64: 2, 2>, scalar_prefetch = 0 : i64, scratch_operands = 1 : i64, tpu.core_type = #tpu.core_type<tc>, window_params = [{transform_indices = @transform_0, window_bounds = array<i64: 1, 16, 256>}, {pipeline_mode = #tpu.pipeline_mode<synchronous>, transform_indices = @transform_1, window_bounds = array<i64: 2, 16>}, {pipeline_mode = #tpu.pipeline_mode<synchronous>, transform_indices = @transform_2, window_bounds = array<i64: 10, 16>}, {pipeline_mode = #tpu.pipeline_mode<synchronous>, transform_indices = @transform_3, window_bounds = array<i64: 16, 8>}, {transform_indices = @transform_4, window_bounds = array<i64: 1>}, {transform_indices = @transform_5, window_bounds = array<i64: 1, 16, 128>}]} {
    %c0_i32 = arith.constant 0 : i32
    %0 = arith.cmpi eq, %arg1, %c0_i32 : i32
    %1 = arith.extui %0 : i1 to i32
    %c0_i32_0 = arith.constant 0 : i32
    %2 = arith.cmpi ne, %1, %c0_i32_0 : i32
    scf.if %2 {
      %c0_17 = arith.constant 0 : index
      %c0_18 = arith.constant 0 : index
      %38 = vector.load %arg4[%c0_17, %c0_18] : memref<10x16xf32, #tpu.memory_space<vmem>>, vector<10x16xf32>
      %39 = arith.truncf %38 : vector<10x16xf32> to vector<10x16xbf16>
      %c0_19 = arith.constant 0 : index
      %c0_20 = arith.constant 0 : index
      %c0_21 = arith.constant 0 : index
      %40 = vector.load %arg2[%c0_19, %c0_20, %c0_21] : memref<1x16x256xf32, #tpu.memory_space<vmem>>, vector<1x16x64xf32>
      %41 = vector.shape_cast %40 : vector<1x16x64xf32> to vector<16x64xf32>
      %42 = arith.truncf %41 : vector<16x64xf32> to vector<16x64xbf16>
      %cst_22 = arith.constant dense<0.000000e+00> : vector<10x64xf32>
      %43 = tpu.matmul %39, %42, %cst_22 {dimension_numbers = #tpu.dot_dimension_numbers<[1], [0], [0], [1], [0, 0, 1, 1], [], []>} : vector<10x16xbf16>, vector<16x64xbf16>, vector<10x64xf32> -> vector<10x64xf32>
      %c0_23 = arith.constant 0 : index
      %c0_24 = arith.constant 0 : index
      %c64 = arith.constant 64 : index
      %44 = vector.load %arg2[%c0_23, %c0_24, %c64] : memref<1x16x256xf32, #tpu.memory_space<vmem>>, vector<1x16x64xf32>
      %45 = vector.shape_cast %44 : vector<1x16x64xf32> to vector<16x64xf32>
      %46 = arith.truncf %45 : vector<16x64xf32> to vector<16x64xbf16>
      %cst_25 = arith.constant dense<0.000000e+00> : vector<10x64xf32>
      %47 = tpu.matmul %39, %46, %cst_25 {dimension_numbers = #tpu.dot_dimension_numbers<[1], [0], [0], [1], [0, 0, 1, 1], [], []>} : vector<10x16xbf16>, vector<16x64xbf16>, vector<10x64xf32> -> vector<10x64xf32>
      %48 = arith.maximumf %43, %47 : vector<10x64xf32>
      %c0_26 = arith.constant 0 : index
      %c0_27 = arith.constant 0 : index
      %c128 = arith.constant 128 : index
      %49 = vector.load %arg2[%c0_26, %c0_27, %c128] : memref<1x16x256xf32, #tpu.memory_space<vmem>>, vector<1x16x64xf32>
      %50 = vector.shape_cast %49 : vector<1x16x64xf32> to vector<16x64xf32>
      %51 = arith.truncf %50 : vector<16x64xf32> to vector<16x64xbf16>
      %cst_28 = arith.constant dense<0.000000e+00> : vector<10x64xf32>
      %52 = tpu.matmul %39, %51, %cst_28 {dimension_numbers = #tpu.dot_dimension_numbers<[1], [0], [0], [1], [0, 0, 1, 1], [], []>} : vector<10x16xbf16>, vector<16x64xbf16>, vector<10x64xf32> -> vector<10x64xf32>
      %53 = arith.maximumf %48, %52 : vector<10x64xf32>
      %c0_29 = arith.constant 0 : index
      %c0_30 = arith.constant 0 : index
      %c192 = arith.constant 192 : index
      %54 = vector.load %arg2[%c0_29, %c0_30, %c192] : memref<1x16x256xf32, #tpu.memory_space<vmem>>, vector<1x16x64xf32>
      %55 = vector.shape_cast %54 : vector<1x16x64xf32> to vector<16x64xf32>
      %56 = arith.truncf %55 : vector<16x64xf32> to vector<16x64xbf16>
      %cst_31 = arith.constant dense<0.000000e+00> : vector<10x64xf32>
      %57 = tpu.matmul %39, %56, %cst_31 {dimension_numbers = #tpu.dot_dimension_numbers<[1], [0], [0], [1], [0, 0, 1, 1], [], []>} : vector<10x16xbf16>, vector<16x64xbf16>, vector<10x64xf32> -> vector<10x64xf32>
      %58 = arith.maximumf %53, %57 : vector<10x64xf32>
      %59 = arith.truncf %58 : vector<10x64xf32> to vector<10x64xbf16>
      %c0_32 = arith.constant 0 : index
      %c0_33 = arith.constant 0 : index
      %60 = vector.load %arg8[%c0_32, %c0_33] : memref<10x64xbf16, #tpu.memory_space<vmem>>, vector<10x64xbf16>
      tpu.vector_store %arg8[%c0_32, %c0_33], %59 {strides = array<i32>} : memref<10x64xbf16, #tpu.memory_space<vmem>>, vector<10x64xbf16>,
    } else {
    }
    %c128_i32 = arith.constant 128 : i32
    %3 = arith.muli %arg1, %c128_i32 : i32
    %4 = tpu.assume_multiple %3, 128 : i32
    %c0 = arith.constant 0 : index
    %c0_1 = arith.constant 0 : index
    %5 = arith.index_cast %4 : i32 to index
    %6 = vector.load %arg2[%c0, %c0_1, %5] : memref<1x16x256xf32, #tpu.memory_space<vmem>>, vector<1x16x128xf32>
    %7 = vector.shape_cast %6 : vector<1x16x128xf32> to vector<16x128xf32>
    %c0_2 = arith.constant 0 : index
    %c0_3 = arith.constant 0 : index
    %8 = vector.load %arg3[%c0_2, %c0_3] : memref<2x16xf32, #tpu.memory_space<vmem>>, vector<2x16xf32>
    %9 = arith.truncf %8 : vector<2x16xf32> to vector<2x16xbf16>
    %10 = arith.truncf %7 : vector<16x128xf32> to vector<16x128xbf16>
    %cst = arith.constant dense<0.000000e+00> : vector<2x128xf32>
    %11 = tpu.matmul %9, %10, %cst {dimension_numbers = #tpu.dot_dimension_numbers<[1], [0], [0], [1], [0, 0, 1, 1], [], []>} : vector<2x16xbf16>, vector<16x128xbf16>, vector<2x128xf32> -> vector<2x128xf32>
    %c0_4 = arith.constant 0 : index
    %c0_5 = arith.constant 0 : index
    %12 = vector.load %arg8[%c0_4, %c0_5] : memref<10x64xbf16, #tpu.memory_space<vmem>>, vector<10x64xbf16>
    %13 = vector.extract_strided_slice %12 {offsets = [0, 0], sizes = [2, 64], strides = [1, 1]} : vector<10x64xbf16> to vector<2x64xbf16>
    %14 = vector.extract_strided_slice %12 {offsets = [2, 0], sizes = [8, 64], strides = [1, 1]} : vector<10x64xbf16> to vector<8x64xbf16>
    %15 = arith.truncf %11 : vector<2x128xf32> to vector<2x128xbf16>
    %cst_6 = arith.constant dense<0.000000e+00> : vector<128x64xf32>
    %16 = tpu.matmul %15, %13, %cst_6 {dimension_numbers = #tpu.dot_dimension_numbers<[0], [0], [1], [1], [0, 1, 1, 1], [], []>} : vector<2x128xbf16>, vector<2x64xbf16>, vector<128x64xf32> -> vector<128x64xf32>
    %cst_7 = arith.constant dense<0xFF800000> : vector<128xf32>
    %17 = vector.multi_reduction <maximumf>, %16, %cst_7 [1] : vector<128x64xf32> to vector<128xf32>
    %18 = vector.shape_cast %17 : vector<128xf32> to vector<128x1xf32>
    %19 = vector.broadcast %18 : vector<128x1xf32> to vector<128x64xf32>
    %20 = arith.subf %16, %19 : vector<128x64xf32>
    %21 = math.exp %20 : vector<128x64xf32>
    %cst_8 = arith.constant dense<0.000000e+00> : vector<128xf32>
    %22 = vector.multi_reduction <add>, %21, %cst_8 [1] : vector<128x64xf32> to vector<128xf32>
    %23 = vector.shape_cast %22 : vector<128xf32> to vector<128x1xf32>
    %24 = tpu.reciprocal %23 {approx = true} : vector<128x1xf32> -> vector<128x1xf32>
    %25 = vector.broadcast %24 : vector<128x1xf32> to vector<128x64xf32>
    %26 = arith.mulf %21, %25 : vector<128x64xf32>
    %27 = arith.truncf %26 : vector<128x64xf32> to vector<128x64xbf16>
    %cst_9 = arith.constant dense<0.000000e+00> : vector<8x128xf32>
    %28 = tpu.matmul %14, %27, %cst_9 {dimension_numbers = #tpu.dot_dimension_numbers<[1], [1], [0], [0], [0, 0, 1, 0], [], []>} : vector<8x64xbf16>, vector<128x64xbf16>, vector<8x128xf32> -> vector<8x128xf32>
    %c0_10 = arith.constant 0 : index
    %c0_11 = arith.constant 0 : index
    %29 = vector.load %arg5[%c0_10, %c0_11] : memref<16x8xf32, #tpu.memory_space<vmem>>, vector<16x8xf32>
    %cst_12 = arith.constant dense<0.000000e+00> : vector<16x128xf32>
    %30 = tpu.matmul %29, %28, %cst_12 {dimension_numbers = #tpu.dot_dimension_numbers<[1], [0], [0], [1], [0, 0, 1, 1], [], []>} : vector<16x8xf32>, vector<8x128xf32>, vector<16x128xf32> -> vector<16x128xf32>
    %c0_13 = arith.constant 0 : index
    %31 = memref.load %arg6[%c0_13] : memref<1xf32, #tpu.memory_space<smem>>
    %32 = vector.broadcast %31 : f32 to vector<16x128xf32>
    %33 = arith.mulf %32, %30 : vector<16x128xf32>
    %34 = arith.addf %33, %7 : vector<16x128xf32>
    %c0_14 = arith.constant 0 : index
    %c0_15 = arith.constant 0 : index
    %c0_16 = arith.constant 0 : index
    %35 = vector.load %arg7[%c0_14, %c0_15, %c0_16] : memref<1x16x128xf32, #tpu.memory_space<vmem>>, vector<1x16x128xf32>
    %36 = vector.shape_cast %35 : vector<1x16x128xf32> to vector<16x128xf32>
    %37 = vector.shape_cast %34 : vector<16x128xf32> to vector<1x16x128xf32>
    tpu.vector_store %arg7[%c0_14, %c0_15, %c0_16], %37 {strides = array<i32>} : memref<1x16x128xf32, #tpu.memory_space<vmem>>, vector<1x16x128xf32>,
    return
  }
  func.func @transform_0(%arg0: i32, %arg1: i32) -> (i32, i32, i32) {
    %c0_i32 = arith.constant 0 : i32
    %c0_i32_0 = arith.constant 0 : i32
    %c0_i32_1 = arith.constant 0 : i32
    return %arg0, %c0_i32, %c0_i32_0 : i32, i32, i32
  }
  func.func @transform_1(%arg0: i32, %arg1: i32) -> (i32, i32) {
    %c0_i32 = arith.constant 0 : i32
    %c0_i32_0 = arith.constant 0 : i32
    %c0_i32_1 = arith.constant 0 : i32
    return %c0_i32, %c0_i32_0 : i32, i32
  }
  func.func @transform_2(%arg0: i32, %arg1: i32) -> (i32, i32) {
    %c0_i32 = arith.constant 0 : i32
    %c0_i32_0 = arith.constant 0 : i32
    %c0_i32_1 = arith.constant 0 : i32
    return %c0_i32, %c0_i32_0 : i32, i32
  }
  func.func @transform_3(%arg0: i32, %arg1: i32) -> (i32, i32) {
    %c0_i32 = arith.constant 0 : i32
    %c0_i32_0 = arith.constant 0 : i32
    %c0_i32_1 = arith.constant 0 : i32
    return %c0_i32, %c0_i32_0 : i32, i32
  }
  func.func @transform_4(%arg0: i32, %arg1: i32) -> i32 {
    %c0_i32 = arith.constant 0 : i32
    %c0_i32_0 = arith.constant 0 : i32
    return %c0_i32 : i32
  }
  func.func @transform_5(%arg0: i32, %arg1: i32) -> (i32, i32, i32) {
    %c0_i32 = arith.constant 0 : i32
    %c0_i32_0 = arith.constant 0 : i32
    return %arg0, %c0_i32, %arg1 : i32, i32, i32
  }
}

</mosaic_0001>

<llo_original>
// kernel: attention_pallas.1
$region0: #{attention_pallas.1}
  #allocation0 [shape = 'u32[]', space=smem, size = 0x4, offset = 0x4, fixed_abs, tag = 'smem constant byte address 0x4 - core index']
  #allocation1 [shape = 'u32[144,128]{1,0:T(1,128)}', space=vmem, size = 0x12000, scoped, tag = 'internal scratch']
  #allocation2 [shape = 'bf16[10,64]{1,0:T(8,128)(2,1)}', space=vmem, size = 0x1000, scoped, tag = 'scratch operand']
  #allocation3 [shape = 'f32[1]{0:T(128)S(6)}', space=smem, size = 0x200, scoped, tag = 'scoped memory for attention_pallas.1']
  %s0 = inlined_call_operand.vmem [shape: f32[2,16,256], index: 0, kind: input, shape index: {}]
  %s1 = inlined_call_operand.vmem [shape: f32[2,16], index: 1, kind: input, shape index: {}]
  %s2 = inlined_call_operand.vmem [shape: f32[10,16], index: 2, kind: input, shape index: {}]
  %s3 = inlined_call_operand.vmem [shape: f32[16,8], index: 3, kind: input, shape index: {}]
  %s4 = inlined_call_operand.<no memory space> [shape: f32[1], index: 4, kind: input, shape index: {}]
  %s5 = inlined_call_operand.vmem [shape: f32[2,16,256], index: 5, kind: output, shape index: {}]
  %s6 = sld [smem:[#allocation0]]
  $region91: #{attention_pallas.1} parent=0
    _
  %s8 = ssub.s32 1, %s6
  %s9 = scalar_select 0, %s8, %s6
  %10 = sst [smem:[#allocation3]] %s4
  $region1: #{attention_pallas.1} parent=0
    #allocation4 [shape = 'u8[16384]{0}', space=vmem, size = 0x4000, scoped, tag = 'output window, operand 0']
    loop: start=0, step=1, limit=6
    $region2: #{attention_pallas.1} parent=1 // loop_pre_header
      _
    $region3: #{attention_pallas.1} parent=1 // loop_header
      %s12 = sphi 0, %s16
      %p13 = scmp.ge.s32.totalorder %s12, 6
      %s19 = sphi 0, %s31
      %s20 = sphi 0, %s27
      %s21 = sphi 0, %s19
      %s22 = sphi 0, %s20
      %s23 = sphi 0, %s21
      %s24 = sphi 0, %s22
      %s34 = sphi 0, %s36
      %s37 = sphi 0, %s34
      %s38 = sphi 0, %s37
      %s54 = sphi 0, %s38
      %s58 = sphi 0, %s58
      %s60 = sphi 0, %s58
      %s61 = sphi 0, %s60
      %s75 = sphi 0, %s61
      %s79 = sphi 0, %s79
      %s81 = sphi 0, %s79
      %s82 = sphi 0, %s81
      %s96 = sphi 0, %s82
      %s100 = sphi 0, %s100
      %s102 = sphi 0, %s100
      %s103 = sphi 0, %s102
      %s117 = sphi 0, %s103
      %s121 = sphi 0, %s121
      %s123 = sphi 0, %s121
      %s124 = sphi 0, %s123
      %s138 = sphi 0, %s124
      %s146 = sphi 0, %s148
      %s149 = sphi 0, %s146
      %s150 = sphi 0, %s149
      %s166 = sphi 0, %s150
    $region4: #{attention_pallas.1} parent=1 // loop_header_branch
      %15 = sbr.rel (%p13) target = $region8
    $region5: #{attention_pallas.1} parent=1 // loop_body
      %s17 = ssub.s32 %s12, 1
      %s18 = ssub.s32 %s12, 2
      %s25 = sadd.s32 1, %s20
      %p26 = scmp.ge.s32.totalorder %s25, 2
      %s27 = scalar_select %p26, 0, %s25
      %s28 = sadd.s32 1, %s19
      %s29 = scalar_select %p26, %s28, %s19
      %p30 = scmp.ge.s32.totalorder %s29, 2
      %s31 = scalar_select %p30, 0, %s29
      %s32 = ssub.s32 %s19, %s31
      %p33 = scmp.eq.s32.totalorder %s32, 0
      %s35 = sadd.s32 %s34, 1
      %s36 = scalar_select %p33, %s34, %s35
      %p39 = pneg %p33
      %p40 = scmp.eq.s32.totalorder %s12, 3
      %p41 = por %p39, %p40
      %p42 = scmp.ne.s32.totalorder %s34, %s37
      %p43 = scmp.eq.s32.totalorder %s12, 0
      %p44 = por %p42, %p43
      %p45 = scmp.ne.s32.totalorder %s34, %s37
      %p46 = scmp.eq.s32.totalorder %s17, 3
      %p47 = por %p45, %p46
      %p48 = scmp.ne.s32.totalorder %s37, %s38
      %p49 = scmp.eq.s32.totalorder %s17, 0
      %p50 = por %p48, %p49
      %p51 = scmp.ne.s32.totalorder %s37, %s38
      %p52 = scmp.eq.s32.totalorder %s18, 3
      %p53 = por %p51, %p52
      %p55 = scmp.ne.s32.totalorder %s38, %s54
      %p56 = scmp.eq.s32.totalorder %s18, 0
      %p57 = por %p55, %p56
      %s59 = sadd.s32 %s58, 1
      %p62 = scmp.eq.s32.totalorder %s12, 3
      %p63 = scmp.ne.s32.totalorder %s58, %s60
      %p64 = scmp.eq.s32.totalorder %s12, 0
      %p65 = por %p63, %p64
      %p66 = scmp.ne.s32.totalorder %s58, %s60
      %p67 = scmp.eq.s32.totalorder %s17, 3
      %p68 = por %p66, %p67
      %p69 = scmp.ne.s32.totalorder %s60, %s61
      %p70 = scmp.eq.s32.totalorder %s17, 0
      %p71 = por %p69, %p70
      %p72 = scmp.ne.s32.totalorder %s60, %s61
      %p73 = scmp.eq.s32.totalorder %s18, 3
      %p74 = por %p72, %p73
      %p76 = scmp.ne.s32.totalorder %s61, %s75
      %p77 = scmp.eq.s32.totalorder %s18, 0
      %p78 = por %p76, %p77
      %s80 = sadd.s32 %s79, 1
      %p83 = scmp.eq.s32.totalorder %s12, 3
      %p84 = scmp.ne.s32.totalorder %s79, %s81
      %p85 = scmp.eq.s32.totalorder %s12, 0
      %p86 = por %p84, %p85
      %p87 = scmp.ne.s32.totalorder %s79, %s81
      %p88 = scmp.eq.s32.totalorder %s17, 3
      %p89 = por %p87, %p88
      %p90 = scmp.ne.s32.totalorder %s81, %s82
      %p91 = scmp.eq.s32.totalorder %s17, 0
      %p92 = por %p90, %p91
      %p93 = scmp.ne.s32.totalorder %s81, %s82
      %p94 = scmp.eq.s32.totalorder %s18, 3
      %p95 = por %p93, %p94
      %p97 = scmp.ne.s32.totalorder %s82, %s96
      %p98 = scmp.eq.s32.totalorder %s18, 0
      %p99 = por %p97, %p98
      %s101 = sadd.s32 %s100, 1
      %p104 = scmp.eq.s32.totalorder %s12, 3
      %p105 = scmp.ne.s32.totalorder %s100, %s102
      %p106 = scmp.eq.s32.totalorder %s12, 0
      %p107 = por %p105, %p106
      %p108 = scmp.ne.s32.totalorder %s100, %s102
      %p109 = scmp.eq.s32.totalorder %s17, 3
      %p110 = por %p108, %p109
      %p111 = scmp.ne.s32.totalorder %s102, %s103
      %p112 = scmp.eq.s32.totalorder %s17, 0
      %p113 = por %p111, %p112
      %p114 = scmp.ne.s32.totalorder %s102, %s103
      %p115 = scmp.eq.s32.totalorder %s18, 3
      %p116 = por %p114, %p115
      %p118 = scmp.ne.s32.totalorder %s103, %s117
      %p119 = scmp.eq.s32.totalorder %s18, 0
      %p120 = por %p118, %p119
      %s122 = sadd.s32 %s121, 1
      %p125 = scmp.eq.s32.totalorder %s12, 3
      %p126 = scmp.ne.s32.totalorder %s121, %s123
      %p127 = scmp.eq.s32.totalorder %s12, 0
      %p128 = por %p126, %p127
      %p129 = scmp.ne.s32.totalorder %s121, %s123
      %p130 = scmp.eq.s32.totalorder %s17, 3
      %p131 = por %p129, %p130
      %p132 = scmp.ne.s32.totalorder %s123, %s124
      %p133 = scmp.eq.s32.totalorder %s17, 0
      %p134 = por %p132, %p133
      %p135 = scmp.ne.s32.totalorder %s123, %s124
      %p136 = scmp.eq.s32.totalorder %s18, 3
      %p137 = por %p135, %p136
      %p139 = scmp.ne.s32.totalorder %s124, %s138
      %p140 = scmp.eq.s32.totalorder %s18, 0
      %p141 = por %p139, %p140
      %s142 = ssub.s32 %s19, %s31
      %s143 = ssub.s32 %s20, %s27
      %s144 = sor.u32 %s142, %s143
      %p145 = scmp.eq.s32.totalorder %s144, 0
      %s147 = sadd.s32 %s146, 1
      %s148 = scalar_select %p145, %s146, %s147
      %p151 = pneg %p145
      %p152 = scmp.eq.s32.totalorder %s12, 3
      %p153 = por %p151, %p152
      %p154 = scmp.ne.s32.totalorder %s146, %s149
      %p155 = scmp.eq.s32.totalorder %s12, 0
      %p156 = por %p154, %p155
      %p157 = scmp.ne.s32.totalorder %s146, %s149
      %p158 = scmp.eq.s32.totalorder %s17, 3
      %p159 = por %p157, %p158
      %p160 = scmp.ne.s32.totalorder %s149, %s150
      %p161 = scmp.eq.s32.totalorder %s17, 0
      %p162 = por %p160, %p161
      %p163 = scmp.ne.s32.totalorder %s149, %s150
      %p164 = scmp.eq.s32.totalorder %s18, 3
      %p165 = por %p163, %p164
      %p167 = scmp.ne.s32.totalorder %s150, %s166
      %p168 = scmp.eq.s32.totalorder %s18, 0
      %p169 = por %p167, %p168
      %p170 = scmp.le.s32.totalorder 1, %s12
      %p171 = scmp.lt.s32.totalorder %s12, 5
      %p172 = pnand %p170, %p171
      %p173 = pneg %p172
      // Predicated region
      $region9: #{attention_pallas.1} parent=5 // pred_check
        _
      $region10: #{attention_pallas.1} parent=5 // pred_check_branch
        %175 = sbr.rel (%p172) target = $region12
      $region11: #{attention_pallas.1} parent=5 // pred_region
        %s176 = ssub.s32 %s12, 1
        // Predicated region
        $region13: #{attention_pallas.1} parent=11 // pred_check
          %p177 = pneg %p71
        $region14: #{attention_pallas.1} parent=11 // pred_check_branch
          %179 = sbr.rel (%p177) target = $region16
        $region15: #{attention_pallas.1} parent=11 // pred_region
          _
        $region16: #{attention_pallas.1} parent=11 // pred_fallthru
          _
        // Predicated region
        $region17: #{attention_pallas.1} parent=11 // pred_check
          %p180 = pneg %p92
        $region18: #{attention_pallas.1} parent=11 // pred_check_branch
          %182 = sbr.rel (%p180) target = $region20
        $region19: #{attention_pallas.1} parent=11 // pred_region
          _
        $region20: #{attention_pallas.1} parent=11 // pred_fallthru
          _
        // Predicated region
        $region21: #{attention_pallas.1} parent=11 // pred_check
          %p183 = pneg %p113
        $region22: #{attention_pallas.1} parent=11 // pred_check_branch
          %185 = sbr.rel (%p183) target = $region24
        $region23: #{attention_pallas.1} parent=11 // pred_region
          _
        $region24: #{attention_pallas.1} parent=11 // pred_fallthru
          _
        // Predicated region
        $region25: #{attention_pallas.1} parent=11 // pred_check
          %p186 = pneg %p134
        $region26: #{attention_pallas.1} parent=11 // pred_check_branch
          %188 = sbr.rel (%p186) target = $region28
        $region27: #{attention_pallas.1} parent=11 // pred_region
          _
        $region28: #{attention_pallas.1} parent=11 // pred_fallthru
          _
      $region12: #{attention_pallas.1} parent=5 // pred_fallthru
        _
      %p189 = scmp.lt.s32.totalorder %s12, 4
      // Predicated region
      $region29: #{attention_pallas.1} parent=5 // pred_check
        %p190 = pneg %p189
      $region30: #{attention_pallas.1} parent=5 // pred_check_branch
        %192 = sbr.rel (%p190) target = $region32
      $region31: #{attention_pallas.1} parent=5 // pred_region
        // Predicated region
        $region33: #{attention_pallas.1} parent=31 // pred_check
          %p193 = pneg %p44
        $region34: #{attention_pallas.1} parent=31 // pred_check_branch
          %195 = sbr.rel (%p193) target = $region36
        $region35: #{attention_pallas.1} parent=31 // pred_region
          %p196 = scmp.lt.s32.totalorder %s19, 1
          %s197 = scalar_select %p196, %s19, 1
          %s198 = smul.addr %s197, 4
          %s199 = smul.addr %s198, 8
          %s200 = scalar_lea.vmem %s0, %s199
        $region36: #{attention_pallas.1} parent=31 // pred_fallthru
          _
      $region32: #{attention_pallas.1} parent=5 // pred_fallthru
        _
      %p201 = scmp.le.s32.totalorder 1, %s12
      %p202 = scmp.lt.s32.totalorder %s12, 5
      %p203 = pnand %p201, %p202
      %p204 = pneg %p203
      // Predicated region
      $region37: #{attention_pallas.1} parent=5 // pred_check
        _
      $region38: #{attention_pallas.1} parent=5 // pred_check_branch
        %206 = sbr.rel (%p203) target = $region40
      $region39: #{attention_pallas.1} parent=5 // pred_region
        %s207 = ssub.s32 %s12, 1
        %p208 = scmp.lt.s32.totalorder %s21, 1
        %s209 = scalar_select %p208, %s21, 1
        %s210 = smul.addr %s209, 4
        %s211 = smul.addr %s210, 8
        %s212 = scalar_lea.vmem %s0, %s211
        %p213 = pneg %p50
        %p214 = pneg %p47
        %p215 = pneg %p71
        %p216 = pneg %p68
        %p217 = pneg %p92
        %p218 = pneg %p89
        %p219 = pneg %p113
        %p220 = pneg %p110
        %p221 = pneg %p134
        %p222 = pneg %p131
        %p223 = pneg %p162
        %p224 = pneg %p159
        %s225 = sand.u32 %s149, 1
        %s226 = sand.u32 %s149, 1
        %s227 = smul.addr %s226, 16
        %s228 = scalar_lea.vmem [#allocation4], %s227
        %p229 = scmp.lt.s32.totalorder %s21, 1
        %s230 = scalar_select %p229, %s21, 1
        %s231 = smul.addr %s230, 4
        %s232 = smul.addr %s231, 8
        %s233 = scalar_lea.vmem %s0, %s232
        %p235 = scmp.eq.s32.totalorder %s22, 0
        // Predicated region
        $region41: #{attention_pallas.1} parent=39 // pred_check
          %p236 = pneg %p235
        $region42: #{attention_pallas.1} parent=39 // pred_check_branch
          %238 = sbr.rel (%p236) target = $region44
        $region43: #{attention_pallas.1} parent=39 // pred_region
          %v239 = vld [vmem:[%s2] sm:$0xff]
          %v240 = vld [vmem:[%s2 + $0x8] sm:$0x3]
          %v241 = vpack.c.bf16 %v240, %v239
          %v242 = vld [vmem:[%s233] sm:$0xff]
          %v243 = vld [vmem:[%s233 + $0x10] sm:$0xff]
          %v244 = vpack.c.bf16 %v243, %v242
          %vm245 = vcmask 130048
          %v247 = vsel %vm245, %v241, 0
          %249 = vmatprep.subr.bf16.mxu0 0
          %250 = vmatpush1.bf16.msra.mxu0 %v244
          %251 = vmatprep.subr.bf16.mxu0 0
          %252 = vmatpush1.bf16.msra.mxu0 0
          %253 = vmatprep.subr.bf16.mxu0 0
          %254 = vmatpush1.bf16.msra.mxu0 0
          %255 = vmatprep.subr.bf16.mxu0 0
          %256 = vmatpush1.bf16.msra.mxu0 0
          %257 = vmatprep.subr.bf16.mxu0 0
          %258 = vmatpush1.bf16.msra.mxu0 0
          %259 = vmatprep.subr.bf16.mxu0 0
          %260 = vmatpush1.bf16.msra.mxu0 0
          %261 = vmatprep.subr.bf16.mxu0 0
          %262 = vmatpush1.bf16.msra.mxu0 0
          %263 = vmatprep.subr.bf16.mxu0 0
          %264 = vmatpush1.bf16.msra.mxu0 0
          %265 = vmatprep.subr.bf16.mxu0 0
          %266 = vmatpush1.bf16.msra.mxu0 0
          %267 = vmatprep.subr.bf16.mxu0 0
          %268 = vmatpush1.bf16.msra.mxu0 0
          %269 = vmatprep.subr.bf16.mxu0 0
          %270 = vmatpush1.bf16.msra.mxu0 0
          %271 = vmatprep.subr.bf16.mxu0 0
          %272 = vmatpush1.bf16.msra.mxu0 0
          %273 = vmatprep.subr.bf16.mxu0 0
          %274 = vmatpush1.bf16.msra.mxu0 0
          %275 = vmatprep.subr.bf16.mxu0 0
          %276 = vmatpush1.bf16.msra.mxu0 0
          %277 = vmatprep.subr.bf16.mxu0 0
          %278 = vmatpush1.bf16.msra.mxu0 0
          %279 = vmatprep.subr.bf16.mxu0 0
          %280 = vmatpush1.bf16.msra.mxu0 0
          %281 = vmatprep.mubr.bf16.mxu0 0
          %282 = vmatmul.mubr.bf16.gmra.mrb[0].mxu0 %v247
          %v283 = vpop.f32.mrb[0].mxu0
          %v284 = vadd.f32 0.0, %v283
          %v285 = vpop.f32.mrb[0].mxu0
          %v286 = vpop.f32.mrb[0].mxu0
          %v287 = vadd.f32 0.0, %v286
          %v288 = vpop.f32.mrb[0].mxu0
          %289 = vdwg.mxu0
          %291 = vrot.lane.b32.xlu0 %v244, 64
          %v292 = vpop.permute.xlu0 %291
          %294 = vmatprep.subr.bf16.mxu0 0
          %295 = vmatpush1.bf16.msra.mxu0 %v292
          %296 = vmatprep.subr.bf16.mxu0 0
          %297 = vmatpush1.bf16.msra.mxu0 0
          %298 = vmatprep.subr.bf16.mxu0 0
          %299 = vmatpush1.bf16.msra.mxu0 0
          %300 = vmatprep.subr.bf16.mxu0 0
          %301 = vmatpush1.bf16.msra.mxu0 0
          %302 = vmatprep.subr.bf16.mxu0 0
          %303 = vmatpush1.bf16.msra.mxu0 0
          %304 = vmatprep.subr.bf16.mxu0 0
          %305 = vmatpush1.bf16.msra.mxu0 0
          %306 = vmatprep.subr.bf16.mxu0 0
          %307 = vmatpush1.bf16.msra.mxu0 0
          %308 = vmatprep.subr.bf16.mxu0 0
          %309 = vmatpush1.bf16.msra.mxu0 0
          %310 = vmatprep.subr.bf16.mxu0 0
          %311 = vmatpush1.bf16.msra.mxu0 0
          %312 = vmatprep.subr.bf16.mxu0 0
          %313 = vmatpush1.bf16.msra.mxu0 0
          %314 = vmatprep.subr.bf16.mxu0 0
          %315 = vmatpush1.bf16.msra.mxu0 0
          %316 = vmatprep.subr.bf16.mxu0 0
          %317 = vmatpush1.bf16.msra.mxu0 0
          %318 = vmatprep.subr.bf16.mxu0 0
          %319 = vmatpush1.bf16.msra.mxu0 0
          %320 = vmatprep.subr.bf16.mxu0 0
          %321 = vmatpush1.bf16.msra.mxu0 0
          %322 = vmatprep.subr.bf16.mxu0 0
          %323 = vmatpush1.bf16.msra.mxu0 0
          %324 = vmatprep.subr.bf16.mxu0 0
          %325 = vmatpush1.bf16.msra.mxu0 0
          %326 = vmatprep.mubr.bf16.mxu0 0
          %327 = vmatmul.mubr.bf16.gmra.mrb[0].mxu0 %v247
          %v328 = vpop.f32.mrb[0].mxu0
          %v329 = vadd.f32 0.0, %v328
          %v330 = vpop.f32.mrb[0].mxu0
          %v331 = vpop.f32.mrb[0].mxu0
          %v332 = vadd.f32 0.0, %v331
          %v333 = vpop.f32.mrb[0].mxu0
          %334 = vdwg.mxu0
          %v335 = vmax.f32 %v284, %v329
          %v336 = vmax.f32 %v287, %v332
          %v337 = vld [vmem:[%s233 + $0x8] sm:$0xff]
          %v338 = vld [vmem:[%s233 + $0x18] sm:$0xff]
          %v339 = vpack.c.bf16 %v338, %v337
          %340 = vmatprep.subr.bf16.mxu0 0
          %341 = vmatpush1.bf16.msra.mxu0 %v339
          %342 = vmatprep.subr.bf16.mxu0 0
          %343 = vmatpush1.bf16.msra.mxu0 0
          %344 = vmatprep.subr.bf16.mxu0 0
          %345 = vmatpush1.bf16.msra.mxu0 0
          %346 = vmatprep.subr.bf16.mxu0 0
          %347 = vmatpush1.bf16.msra.mxu0 0
          %348 = vmatprep.subr.bf16.mxu0 0
          %349 = vmatpush1.bf16.msra.mxu0 0
          %350 = vmatprep.subr.bf16.mxu0 0
          %351 = vmatpush1.bf16.msra.mxu0 0
          %352 = vmatprep.subr.bf16.mxu0 0
          %353 = vmatpush1.bf16.msra.mxu0 0
          %354 = vmatprep.subr.bf16.mxu0 0
          %355 = vmatpush1.bf16.msra.mxu0 0
          %356 = vmatprep.subr.bf16.mxu0 0
          %357 = vmatpush1.bf16.msra.mxu0 0
          %358 = vmatprep.subr.bf16.mxu0 0
          %359 = vmatpush1.bf16.msra.mxu0 0
          %360 = vmatprep.subr.bf16.mxu0 0
          %361 = vmatpush1.bf16.msra.mxu0 0
          %362 = vmatprep.subr.bf16.mxu0 0
          %363 = vmatpush1.bf16.msra.mxu0 0
          %364 = vmatprep.subr.bf16.mxu0 0
          %365 = vmatpush1.bf16.msra.mxu0 0
          %366 = vmatprep.subr.bf16.mxu0 0
          %367 = vmatpush1.bf16.msra.mxu0 0
          %368 = vmatprep.subr.bf16.mxu0 0
          %369 = vmatpush1.bf16.msra.mxu0 0
          %370 = vmatprep.subr.bf16.mxu0 0
          %371 = vmatpush1.bf16.msra.mxu0 0
          %372 = vmatprep.mubr.bf16.mxu0 0
          %373 = vmatmul.mubr.bf16.gmra.mrb[0].mxu0 %v247
          %v374 = vpop.f32.mrb[0].mxu0
          %v375 = vadd.f32 0.0, %v374
          %v376 = vpop.f32.mrb[0].mxu0
          %v377 = vpop.f32.mrb[0].mxu0
          %v378 = vadd.f32 0.0, %v377
          %v379 = vpop.f32.mrb[0].mxu0
          %380 = vdwg.mxu0
          %v381 = vmax.f32 %v335, %v375
          %v382 = vmax.f32 %v336, %v378
          %384 = vrot.lane.b32.xlu0 %v339, 64
          %v385 = vpop.permute.xlu0 %384
          %387 = vmatprep.subr.bf16.mxu0 0
          %388 = vmatpush1.bf16.msra.mxu0 %v385
          %389 = vmatprep.subr.bf16.mxu0 0
          %390 = vmatpush1.bf16.msra.mxu0 0
          %391 = vmatprep.subr.bf16.mxu0 0
          %392 = vmatpush1.bf16.msra.mxu0 0
          %393 = vmatprep.subr.bf16.mxu0 0
          %394 = vmatpush1.bf16.msra.mxu0 0
          %395 = vmatprep.subr.bf16.mxu0 0
          %396 = vmatpush1.bf16.msra.mxu0 0
          %397 = vmatprep.subr.bf16.mxu0 0
          %398 = vmatpush1.bf16.msra.mxu0 0
          %399 = vmatprep.subr.bf16.mxu0 0
          %400 = vmatpush1.bf16.msra.mxu0 0
          %401 = vmatprep.subr.bf16.mxu0 0
          %402 = vmatpush1.bf16.msra.mxu0 0
          %403 = vmatprep.subr.bf16.mxu0 0
          %404 = vmatpush1.bf16.msra.mxu0 0
          %405 = vmatprep.subr.bf16.mxu0 0
          %406 = vmatpush1.bf16.msra.mxu0 0
          %407 = vmatprep.subr.bf16.mxu0 0
          %408 = vmatpush1.bf16.msra.mxu0 0
          %409 = vmatprep.subr.bf16.mxu0 0
          %410 = vmatpush1.bf16.msra.mxu0 0
          %411 = vmatprep.subr.bf16.mxu0 0
          %412 = vmatpush1.bf16.msra.mxu0 0
          %413 = vmatprep.subr.bf16.mxu0 0
          %414 = vmatpush1.bf16.msra.mxu0 0
          %415 = vmatprep.subr.bf16.mxu0 0
          %416 = vmatpush1.bf16.msra.mxu0 0
          %417 = vmatprep.subr.bf16.mxu0 0
          %418 = vmatpush1.bf16.msra.mxu0 0
          %419 = vmatprep.mubr.bf16.mxu0 0
          %420 = vmatmul.mubr.bf16.gmra.mrb[0].mxu0 %v247
          %v421 = vpop.f32.mrb[0].mxu0
          %v422 = vadd.f32 0.0, %v421
          %v423 = vpop.f32.mrb[0].mxu0
          %v424 = vpop.f32.mrb[0].mxu0
          %v425 = vadd.f32 0.0, %v424
          %v426 = vpop.f32.mrb[0].mxu0
          %427 = vdwg.mxu0
          %v428 = vmax.f32 %v381, %v422
          %v429 = vmax.f32 %v382, %v425
          %v430 = vpack.c.bf16 %v429, %v428
          %v432 = vunpack.c.l.b16 %v430
          %v433 = vunpack.c.h.b16 %v430
          %v434 = vpack.c.b16 %v432, %v432
          %v435 = vpack.c.b16 %v433, %v433
          %vm438 = vcmask 519168
          %439 = vst.msk [vmem:[#allocation2] sm:$0xf] %vm438, %v434
          %vm440 = vcmask 516096
          %441 = vst.msk [vmem:[#allocation2 + $0x4] sm:$0x1] %vm440, %v435
        $region44: #{attention_pallas.1} parent=39 // pred_fallthru
          _
        %s442 = smul.u32 %s22, 128
        %s443 = sshra.s32 %s442, 7
        %s444 = sand.u32 %s442, 127
        %s445 = smul.addr %s443, 8
        %s446 = scalar_lea.vmem %s233, %s445
        %v447 = vld [vmem:[%s446] sm:$0xff]
        %v448 = vld [vmem:[%s446 + $0x10] sm:$0xff]
        %v449 = vld [vmem:[%s1] sm:$0x3]
        %v450 = vpack.c.bf16 %v449, %v449
        %v451 = vpack.c.bf16 %v448, %v447
        %vm452 = vcmask 130048
        %v454 = vsel %vm452, %v450, 0
        %456 = vmatprep.subr.bf16.mxu0 0
        %457 = vmatpush1.bf16.msra.mxu0 %v451
        %458 = vmatprep.subr.bf16.mxu0 0
        %459 = vmatpush1.bf16.msra.mxu0 0
        %460 = vmatprep.subr.bf16.mxu0 0
        %461 = vmatpush1.bf16.msra.mxu0 0
        %462 = vmatprep.subr.bf16.mxu0 0
        %463 = vmatpush1.bf16.msra.mxu0 0
        %464 = vmatprep.subr.bf16.mxu0 0
        %465 = vmatpush1.bf16.msra.mxu0 0
        %466 = vmatprep.subr.bf16.mxu0 0
        %467 = vmatpush1.bf16.msra.mxu0 0
        %468 = vmatprep.subr.bf16.mxu0 0
        %469 = vmatpush1.bf16.msra.mxu0 0
        %470 = vmatprep.subr.bf16.mxu0 0
        %471 = vmatpush1.bf16.msra.mxu0 0
        %472 = vmatprep.subr.bf16.mxu0 0
        %473 = vmatpush1.bf16.msra.mxu0 0
        %474 = vmatprep.subr.bf16.mxu0 0
        %475 = vmatpush1.bf16.msra.mxu0 0
        %476 = vmatprep.subr.bf16.mxu0 0
        %477 = vmatpush1.bf16.msra.mxu0 0
        %478 = vmatprep.subr.bf16.mxu0 0
        %479 = vmatpush1.bf16.msra.mxu0 0
        %480 = vmatprep.subr.bf16.mxu0 0
        %481 = vmatpush1.bf16.msra.mxu0 0
        %482 = vmatprep.subr.bf16.mxu0 0
        %483 = vmatpush1.bf16.msra.mxu0 0
        %484 = vmatprep.subr.bf16.mxu0 0
        %485 = vmatpush1.bf16.msra.mxu0 0
        %486 = vmatprep.subr.bf16.mxu0 0
        %487 = vmatpush1.bf16.msra.mxu0 0
        %488 = vmatprep.mubr.bf16.mxu0 0
        %489 = vmatmul.mubr.bf16.gmra.mrb[0].mxu0 %v454
        %v490 = vpop.f32.mrb[0].mxu0
        %v491 = vadd.f32 0.0, %v490
        %v492 = vpop.f32.mrb[0].mxu0
        %v493 = vpop.f32.mrb[0].mxu0
        %v494 = vpop.f32.mrb[0].mxu0
        %495 = vdwg.mxu0
        %v496 = vld [vmem:[#allocation2] sm:$0xf]
        %v497 = vld [vmem:[#allocation2 + $0x4] sm:$0x1]
        %v498 = vpack.c.bf16 %v491, %v491
        %499 = vxpose.xlu0.c.b16.start [1/8] %v498, 128
        %500 = vxpose.xlu0.c.b16.cont [2/8] 0, 128
        %501 = vxpose.xlu0.c.b16.cont [3/8] 0, 128
        %502 = vxpose.xlu0.c.b16.cont [4/8] 0, 128
        %503 = vxpose.xlu0.c.b16.cont [5/8] 0, 128
        %504 = vxpose.xlu0.c.b16.cont [6/8] 0, 128
        %505 = vxpose.xlu0.c.b16.cont [7/8] 0, 128
        %506 = vxpose.xlu0.c.b16.end [8/8] 0, 128
        %v507 = vpop.trf.xlu0
        %v508 = vpop.trf.xlu0
        %v509 = vpop.trf.xlu0
        %v510 = vpop.trf.xlu0
        %v511 = vpop.trf.xlu0
        %v512 = vpop.trf.xlu0
        %v513 = vpop.trf.xlu0
        %v514 = vpop.trf.xlu0
        %vm515 = vcmask 15360
        %v517 = vsel %vm515, %v507, 0
        %v520 = vsel %vm515, %v508, 0
        %v523 = vsel %vm515, %v509, 0
        %v526 = vsel %vm515, %v510, 0
        %v529 = vsel %vm515, %v511, 0
        %v532 = vsel %vm515, %v512, 0
        %v535 = vsel %vm515, %v513, 0
        %v538 = vsel %vm515, %v514, 0
        %vm540 = vcmask 1040384
        %v542 = vsel %vm540, %v496, 0
        %544 = vmatprep.subr.bf16.mxu0 0
        %545 = vmatpush1.bf16.msra.mxu0 %v542
        %546 = vmatprep.subr.bf16.mxu0 0
        %547 = vmatpush1.bf16.msra.mxu0 0
        %548 = vmatprep.subr.bf16.mxu0 0
        %549 = vmatpush1.bf16.msra.mxu0 0
        %550 = vmatprep.subr.bf16.mxu0 0
        %551 = vmatpush1.bf16.msra.mxu0 0
        %552 = vmatprep.subr.bf16.mxu0 0
        %553 = vmatpush1.bf16.msra.mxu0 0
        %554 = vmatprep.subr.bf16.mxu0 0
        %555 = vmatpush1.bf16.msra.mxu0 0
        %556 = vmatprep.subr.bf16.mxu0 0
        %557 = vmatpush1.bf16.msra.mxu0 0
        %558 = vmatprep.subr.bf16.mxu0 0
        %559 = vmatpush1.bf16.msra.mxu0 0
        %560 = vmatprep.subr.bf16.mxu0 0
        %561 = vmatpush1.bf16.msra.mxu0 0
        %562 = vmatprep.subr.bf16.mxu0 0
        %563 = vmatpush1.bf16.msra.mxu0 0
        %564 = vmatprep.subr.bf16.mxu0 0
        %565 = vmatpush1.bf16.msra.mxu0 0
        %566 = vmatprep.subr.bf16.mxu0 0
        %567 = vmatpush1.bf16.msra.mxu0 0
        %568 = vmatprep.subr.bf16.mxu0 0
        %569 = vmatpush1.bf16.msra.mxu0 0
        %570 = vmatprep.subr.bf16.mxu0 0
        %571 = vmatpush1.bf16.msra.mxu0 0
        %572 = vmatprep.subr.bf16.mxu0 0
        %573 = vmatpush1.bf16.msra.mxu0 0
        %574 = vmatprep.subr.bf16.mxu0 0
        %575 = vmatpush1.bf16.msra.mxu0 0
        %576 = vmatprep.mubr.bf16.mxu0 0
        %577 = vmatmul.mubr.bf16.gmra.mrb[0].mxu0 %v517
        %v578 = vpop.f32.mrb[0].mxu0
        %v579 = vadd.f32 0.0, %v578
        %v580 = vpop.f32.mrb[0].mxu0
        %v581 = vpop.f32.mrb[0].mxu0
        %v582 = vadd.f32 0.0, %v581
        %v583 = vpop.f32.mrb[0].mxu0
        %584 = vmatprep.mubr.bf16.mxu0 0
        %585 = vmatmul.mubr.bf16.gmra.mrb[0].mxu0 %v520
        %v586 = vpop.f32.mrb[0].mxu0
        %v587 = vadd.f32 0.0, %v586
        %v588 = vpop.f32.mrb[0].mxu0
        %v589 = vpop.f32.mrb[0].mxu0
        %v590 = vadd.f32 0.0, %v589
        %v591 = vpop.f32.mrb[0].mxu0
        %592 = vmatprep.mubr.bf16.mxu0 0
        %593 = vmatmul.mubr.bf16.gmra.mrb[0].mxu0 %v523
        %v594 = vpop.f32.mrb[0].mxu0
        %v595 = vadd.f32 0.0, %v594
        %v596 = vpop.f32.mrb[0].mxu0
        %v597 = vpop.f32.mrb[0].mxu0
        %v598 = vadd.f32 0.0, %v597
        %v599 = vpop.f32.mrb[0].mxu0
        %600 = vmatprep.mubr.bf16.mxu0 0
        %601 = vmatmul.mubr.bf16.gmra.mrb[0].mxu0 %v526
        %v602 = vpop.f32.mrb[0].mxu0
        %v603 = vadd.f32 0.0, %v602
        %v604 = vpop.f32.mrb[0].mxu0
        %v605 = vpop.f32.mrb[0].mxu0
        %v606 = vadd.f32 0.0, %v605
        %v607 = vpop.f32.mrb[0].mxu0
        %608 = vmatprep.mubr.bf16.mxu0 0
        %609 = vmatmul.mubr.bf16.gmra.mrb[0].mxu0 %v529
        %v610 = vpop.f32.mrb[0].mxu0
        %v611 = vadd.f32 0.0, %v610
        %v612 = vpop.f32.mrb[0].mxu0
        %v613 = vpop.f32.mrb[0].mxu0
        %v614 = vadd.f32 0.0, %v613
        %v615 = vpop.f32.mrb[0].mxu0
        %616 = vmatprep.mubr.bf16.mxu0 0
        %617 = vmatmul.mubr.bf16.gmra.mrb[0].mxu0 %v532
        %v618 = vpop.f32.mrb[0].mxu0
        %v619 = vadd.f32 0.0, %v618
        %v620 = vpop.f32.mrb[0].mxu0
        %v621 = vpop.f32.mrb[0].mxu0
        %v622 = vadd.f32 0.0, %v621
        %v623 = vpop.f32.mrb[0].mxu0
        %624 = vmatprep.mubr.bf16.mxu0 0
        %625 = vmatmul.mubr.bf16.gmra.mrb[0].mxu0 %v535
        %v626 = vpop.f32.mrb[0].mxu0
        %v627 = vadd.f32 0.0, %v626
        %v628 = vpop.f32.mrb[0].mxu0
        %v629 = vpop.f32.mrb[0].mxu0
        %v630 = vadd.f32 0.0, %v629
        %v631 = vpop.f32.mrb[0].mxu0
        %632 = vmatprep.mubr.bf16.mxu0 0
        %633 = vmatmul.mubr.bf16.gmra.mrb[0].mxu0 %v538
        %v634 = vpop.f32.mrb[0].mxu0
        %v635 = vadd.f32 0.0, %v634
        %v636 = vpop.f32.mrb[0].mxu0
        %v637 = vpop.f32.mrb[0].mxu0
        %v638 = vadd.f32 0.0, %v637
        %v639 = vpop.f32.mrb[0].mxu0
        %640 = vdwg.mxu0
        %vm641 = vcmask 523264
        %v642 = vsel %vm641, %v579, -inf
        %643 = vmax.xlane.f32.xlu0 %v642
        %v644 = vpop.xlane.xlu0 %643
        %v645 = vsel %vm641, %v582, -inf
        %646 = vmax.xlane.f32.xlu0 %v645
        %v647 = vpop.xlane.xlu0 %646
        %v648 = vsel %vm641, %v587, -inf
        %649 = vmax.xlane.f32.xlu0 %v648
        %v650 = vpop.xlane.xlu0 %649
        %v651 = vsel %vm641, %v590, -inf
        %652 = vmax.xlane.f32.xlu0 %v651
        %v653 = vpop.xlane.xlu0 %652
        %v654 = vsel %vm641, %v595, -inf
        %655 = vmax.xlane.f32.xlu0 %v654
        %v656 = vpop.xlane.xlu0 %655
        %v657 = vsel %vm641, %v598, -inf
        %658 = vmax.xlane.f32.xlu0 %v657
        %v659 = vpop.xlane.xlu0 %658
        %v660 = vsel %vm641, %v603, -inf
        %661 = vmax.xlane.f32.xlu0 %v660
        %v662 = vpop.xlane.xlu0 %661
        %v663 = vsel %vm641, %v606, -inf
        %664 = vmax.xlane.f32.xlu0 %v663
        %v665 = vpop.xlane.xlu0 %664
        %v666 = vsel %vm641, %v611, -inf
        %667 = vmax.xlane.f32.xlu0 %v666
        %v668 = vpop.xlane.xlu0 %667
        %v669 = vsel %vm641, %v614, -inf
        %670 = vmax.xlane.f32.xlu0 %v669
        %v671 = vpop.xlane.xlu0 %670
        %v672 = vsel %vm641, %v619, -inf
        %673 = vmax.xlane.f32.xlu0 %v672
        %v674 = vpop.xlane.xlu0 %673
        %v675 = vsel %vm641, %v622, -inf
        %676 = vmax.xlane.f32.xlu0 %v675
        %v677 = vpop.xlane.xlu0 %676
        %v678 = vsel %vm641, %v627, -inf
        %679 = vmax.xlane.f32.xlu0 %v678
        %v680 = vpop.xlane.xlu0 %679
        %v681 = vsel %vm641, %v630, -inf
        %682 = vmax.xlane.f32.xlu0 %v681
        %v683 = vpop.xlane.xlu0 %682
        %v684 = vsel %vm641, %v635, -inf
        %685 = vmax.xlane.f32.xlu0 %v684
        %v686 = vpop.xlane.xlu0 %685
        %v687 = vsel %vm641, %v638, -inf
        %688 = vmax.xlane.f32.xlu0 %v687
        %v689 = vpop.xlane.xlu0 %688
        %v690 = vsub.f32 %v579, %v644
        %v691 = vsub.f32 %v582, %v647
        %v692 = vsub.f32 %v587, %v650
        %v693 = vsub.f32 %v590, %v653
        %v694 = vsub.f32 %v595, %v656
        %v695 = vsub.f32 %v598, %v659
        %v696 = vsub.f32 %v603, %v662
        %v697 = vsub.f32 %v606, %v665
        %v698 = vsub.f32 %v611, %v668
        %v699 = vsub.f32 %v614, %v671
        %v700 = vsub.f32 %v619, %v674
        %v701 = vsub.f32 %v622, %v677
        %v702 = vsub.f32 %v627, %v680
        %v703 = vsub.f32 %v630, %v683
        %v704 = vsub.f32 %v635, %v686
        %v705 = vsub.f32 %v638, %v689
        %v706 = vmul.f32 %v690, 1.442695
        %v707 = vpow.pop %v706
        %v708 = vmul.f32 %v691, 1.442695
        %v709 = vpow.pop %v708
        %v710 = vmul.f32 %v692, 1.442695
        %v711 = vpow.pop %v710
        %v712 = vmul.f32 %v693, 1.442695
        %v713 = vpow.pop %v712
        %v714 = vmul.f32 %v694, 1.442695
        %v715 = vpow.pop %v714
        %v716 = vmul.f32 %v695, 1.442695
        %v717 = vpow.pop %v716
        %v718 = vmul.f32 %v696, 1.442695
        %v719 = vpow.pop %v718
        %v720 = vmul.f32 %v697, 1.442695
        %v721 = vpow.pop %v720
        %v722 = vmul.f32 %v698, 1.442695
        %v723 = vpow.pop %v722
        %v724 = vmul.f32 %v699, 1.442695
        %v725 = vpow.pop %v724
        %v726 = vmul.f32 %v700, 1.442695
        %v727 = vpow.pop %v726
        %v728 = vmul.f32 %v701, 1.442695
        %v729 = vpow.pop %v728
        %v730 = vmul.f32 %v702, 1.442695
        %v731 = vpow.pop %v730
        %v732 = vmul.f32 %v703, 1.442695
        %v733 = vpow.pop %v732
        %v734 = vmul.f32 %v704, 1.442695
        %v735 = vpow.pop %v734
        %v736 = vmul.f32 %v705, 1.442695
        %v737 = vpow.pop %v736
        %v738 = vsel %vm641, %v707, 0.0
        %739 = vadd.xlane.f32.xlu0 %v738
        %v740 = vpop.xlane.xlu0 %739
        %v741 = vsel %vm641, %v709, 0.0
        %742 = vadd.xlane.f32.xlu0 %v741
        %v743 = vpop.xlane.xlu0 %742
        %v744 = vsel %vm641, %v711, 0.0
        %745 = vadd.xlane.f32.xlu0 %v744
        %v746 = vpop.xlane.xlu0 %745
        %v747 = vsel %vm641, %v713, 0.0
        %748 = vadd.xlane.f32.xlu0 %v747
        %v749 = vpop.xlane.xlu0 %748
        %v750 = vsel %vm641, %v715, 0.0
        %751 = vadd.xlane.f32.xlu0 %v750
        %v752 = vpop.xlane.xlu0 %751
        %v753 = vsel %vm641, %v717, 0.0
        %754 = vadd.xlane.f32.xlu0 %v753
        %v755 = vpop.xlane.xlu0 %754
        %v756 = vsel %vm641, %v719, 0.0
        %757 = vadd.xlane.f32.xlu0 %v756
        %v758 = vpop.xlane.xlu0 %757
        %v759 = vsel %vm641, %v721, 0.0
        %760 = vadd.xlane.f32.xlu0 %v759
        %v761 = vpop.xlane.xlu0 %760
        %v762 = vsel %vm641, %v723, 0.0
        %763 = vadd.xlane.f32.xlu0 %v762
        %v764 = vpop.xlane.xlu0 %763
        %v765 = vsel %vm641, %v725, 0.0
        %766 = vadd.xlane.f32.xlu0 %v765
        %v767 = vpop.xlane.xlu0 %766
        %v768 = vsel %vm641, %v727, 0.0
        %769 = vadd.xlane.f32.xlu0 %v768
        %v770 = vpop.xlane.xlu0 %769
        %v771 = vsel %vm641, %v729, 0.0
        %772 = vadd.xlane.f32.xlu0 %v771
        %v773 = vpop.xlane.xlu0 %772
        %v774 = vsel %vm641, %v731, 0.0
        %775 = vadd.xlane.f32.xlu0 %v774
        %v776 = vpop.xlane.xlu0 %775
        %v777 = vsel %vm641, %v733, 0.0
        %778 = vadd.xlane.f32.xlu0 %v777
        %v779 = vpop.xlane.xlu0 %778
        %v780 = vsel %vm641, %v735, 0.0
        %781 = vadd.xlane.f32.xlu0 %v780
        %v782 = vpop.xlane.xlu0 %781
        %v783 = vsel %vm641, %v737, 0.0
        %784 = vadd.xlane.f32.xlu0 %v783
        %v785 = vpop.xlane.xlu0 %784
        %v786 = vrcp.pop %v740
        %v787 = vrcp.pop %v743
        %v788 = vrcp.pop %v746
        %v789 = vrcp.pop %v749
        %v790 = vrcp.pop %v752
        %v791 = vrcp.pop %v755
        %v792 = vrcp.pop %v758
        %v793 = vrcp.pop %v761
        %v794 = vrcp.pop %v764
        %v795 = vrcp.pop %v767
        %v796 = vrcp.pop %v770
        %v797 = vrcp.pop %v773
        %v798 = vrcp.pop %v776
        %v799 = vrcp.pop %v779
        %v800 = vrcp.pop %v782
        %v801 = vrcp.pop %v785
        %v802 = vmul.f32 %v707, %v786
        %v803 = vmul.f32 %v709, %v787
        %v804 = vmul.f32 %v711, %v788
        %v805 = vmul.f32 %v713, %v789
        %v806 = vmul.f32 %v715, %v790
        %v807 = vmul.f32 %v717, %v791
        %v808 = vmul.f32 %v719, %v792
        %v809 = vmul.f32 %v721, %v793
        %v810 = vmul.f32 %v723, %v794
        %v811 = vmul.f32 %v725, %v795
        %v812 = vmul.f32 %v727, %v796
        %v813 = vmul.f32 %v729, %v797
        %v814 = vmul.f32 %v731, %v798
        %v815 = vmul.f32 %v733, %v799
        %v816 = vmul.f32 %v735, %v800
        %v817 = vmul.f32 %v737, %v801
        %v818 = vpack.c.bf16 %v803, %v802
        %v819 = vpack.c.bf16 %v805, %v804
        %v820 = vpack.c.bf16 %v807, %v806
        %v821 = vpack.c.bf16 %v809, %v808
        %v822 = vpack.c.bf16 %v811, %v810
        %v823 = vpack.c.bf16 %v813, %v812
        %v824 = vpack.c.bf16 %v815, %v814
        %v825 = vpack.c.bf16 %v817, %v816
        %v828 = vunpack.c.l.b16 %v496
        %v829 = vunpack.c.l.b16 %v497
        %v830 = vpack.c.b16 %v829, %v828
        %v831 = vrot.slane %v830, 1
        %v833 = vsel %vm641, %v831, 0
        %v836 = vsel %vm641, %v818, 0
        %v839 = vsel %vm641, %v819, 0
        %v842 = vsel %vm641, %v820, 0
        %v845 = vsel %vm641, %v821, 0
        %v848 = vsel %vm641, %v822, 0
        %v851 = vsel %vm641, %v823, 0
        %v854 = vsel %vm641, %v824, 0
        %v857 = vsel %vm641, %v825, 0
        %859 = vmatprep.subr.bf16.mxu0 0
        %860 = vmatpush1.bf16.xpose.msra.mxu0 %v836
        %861 = vmatprep.subr.bf16.mxu0 0
        %862 = vmatpush1.bf16.xpose.msra.mxu0 %v839
        %863 = vmatprep.subr.bf16.mxu0 0
        %864 = vmatpush1.bf16.xpose.msra.mxu0 %v842
        %865 = vmatprep.subr.bf16.mxu0 0
        %866 = vmatpush1.bf16.xpose.msra.mxu0 %v845
        %867 = vmatprep.subr.bf16.mxu0 0
        %868 = vmatpush1.bf16.xpose.msra.mxu0 %v848
        %869 = vmatprep.subr.bf16.mxu0 0
        %870 = vmatpush1.bf16.xpose.msra.mxu0 %v851
        %871 = vmatprep.subr.bf16.mxu0 0
        %872 = vmatpush1.bf16.xpose.msra.mxu0 %v854
        %873 = vmatprep.subr.bf16.mxu0 0
        %874 = vmatpush1.bf16.xpose.msra.mxu0 %v857
        %875 = vmatprep.subr.bf16.mxu0 0
        %876 = vmatpush1.bf16.xpose.msra.mxu0 0
        %877 = vmatprep.subr.bf16.mxu0 0
        %878 = vmatpush1.bf16.xpose.msra.mxu0 0
        %879 = vmatprep.subr.bf16.mxu0 0
        %880 = vmatpush1.bf16.xpose.msra.mxu0 0
        %881 = vmatprep.subr.bf16.mxu0 0
        %882 = vmatpush1.bf16.xpose.msra.mxu0 0
        %883 = vmatprep.subr.bf16.mxu0 0
        %884 = vmatpush1.bf16.xpose.msra.mxu0 0
        %885 = vmatprep.subr.bf16.mxu0 0
        %886 = vmatpush1.bf16.xpose.msra.mxu0 0
        %887 = vmatprep.subr.bf16.mxu0 0
        %888 = vmatpush1.bf16.xpose.msra.mxu0 0
        %889 = vmatprep.subr.bf16.mxu0 0
        %890 = vmatpush1.bf16.xpose.msra.mxu0 0
        %891 = vmatprep.mubr.bf16.mxu0 0
        %892 = vmatmul.mubr.bf16.gmra.mrb[0].mxu0 %v833
        %v893 = vpop.f32.mrb[0].mxu0
        %v894 = vadd.f32 0.0, %v893
        %v895 = vpop.f32.mrb[0].mxu0
        %v896 = vpop.f32.mrb[0].mxu0
        %v897 = vpop.f32.mrb[0].mxu0
        %898 = vdwg.mxu0
        %v899 = vld [vmem:[%s3] sm:$0xff]
        %v900 = vld [vmem:[%s3 + $0x8] sm:$0xff]
        %vm901 = vcmask 64512
        %v903 = vsel %vm901, %v899, 0
        %v906 = vsel %vm901, %v900, 0
        %908 = vmatprep.subr.mxu0 0.0
        %909 = vmatpush1.msra.mxu0 %v894
        %910 = vmatprep.subr.mxu0 0.0
        %911 = vmatpush1.msra.mxu0 0.0
        %912 = vmatprep.subr.mxu0 0.0
        %913 = vmatpush1.msra.mxu0 0.0
        %914 = vmatprep.subr.mxu0 0.0
        %915 = vmatpush1.msra.mxu0 0.0
        %916 = vmatprep.subr.mxu0 0.0
        %917 = vmatpush1.msra.mxu0 0.0
        %918 = vmatprep.subr.mxu0 0.0
        %919 = vmatpush1.msra.mxu0 0.0
        %920 = vmatprep.subr.mxu0 0.0
        %921 = vmatpush1.msra.mxu0 0.0
        %922 = vmatprep.subr.mxu0 0.0
        %923 = vmatpush1.msra.mxu0 0.0
        %924 = vmatprep.subr.mxu0 0.0
        %925 = vmatpush1.msra.mxu0 0.0
        %926 = vmatprep.subr.mxu0 0.0
        %927 = vmatpush1.msra.mxu0 0.0
        %928 = vmatprep.subr.mxu0 0.0
        %929 = vmatpush1.msra.mxu0 0.0
        %930 = vmatprep.subr.mxu0 0.0
        %931 = vmatpush1.msra.mxu0 0.0
        %932 = vmatprep.subr.mxu0 0.0
        %933 = vmatpush1.msra.mxu0 0.0
        %934 = vmatprep.subr.mxu0 0.0
        %935 = vmatpush1.msra.mxu0 0.0
        %936 = vmatprep.subr.mxu0 0.0
        %937 = vmatpush1.msra.mxu0 0.0
        %938 = vmatprep.subr.mxu0 0.0
        %939 = vmatpush1.msra.mxu0 0.0
        %940 = vmatprep.subr.mxu0 0.0
        %941 = vmatpush1.msra.mxu0 0.0
        %942 = vmatprep.subr.mxu0 0.0
        %943 = vmatpush1.msra.mxu0 0.0
        %944 = vmatprep.subr.mxu0 0.0
        %945 = vmatpush1.msra.mxu0 0.0
        %946 = vmatprep.subr.mxu0 0.0
        %947 = vmatpush1.msra.mxu0 0.0
        %948 = vmatprep.subr.mxu0 0.0
        %949 = vmatpush1.msra.mxu0 0.0
        %950 = vmatprep.subr.mxu0 0.0
        %951 = vmatpush1.msra.mxu0 0.0
        %952 = vmatprep.subr.mxu0 0.0
        %953 = vmatpush1.msra.mxu0 0.0
        %954 = vmatprep.subr.mxu0 0.0
        %955 = vmatpush1.msra.mxu0 0.0
        %956 = vmatprep.subr.mxu0 0.0
        %957 = vmatpush1.msra.mxu0 0.0
        %958 = vmatprep.subr.mxu0 0.0
        %959 = vmatpush1.msra.mxu0 0.0
        %960 = vmatprep.subr.mxu0 0.0
        %961 = vmatpush1.msra.mxu0 0.0
        %962 = vmatprep.subr.mxu0 0.0
        %963 = vmatpush1.msra.mxu0 0.0
        %964 = vmatprep.subr.mxu0 0.0
        %965 = vmatpush1.msra.mxu0 0.0
        %966 = vmatprep.subr.mxu0 0.0
        %967 = vmatpush1.msra.mxu0 0.0
        %968 = vmatprep.subr.mxu0 0.0
        %969 = vmatpush1.msra.mxu0 0.0
        %970 = vmatprep.subr.mxu0 0.0
        %971 = vmatpush1.msra.mxu0 0.0
        %972 = vmatprep.mubr.f32.mxu0 0.0
        %973 = vmatmul.mubr.f32.gmra.mrb[0].mxu0 %v903
        %v974 = vpop.f32.mrb[0].mxu0
        %v975 = vadd.f32 0.0, %v974
        %v976 = vpop.f32.mrb[0].mxu0
        %977 = vmatprep.mubr.f32.mxu0 0.0
        %978 = vmatmul.mubr.f32.gmra.mrb[0].mxu0 %v906
        %v979 = vpop.f32.mrb[0].mxu0
        %v980 = vadd.f32 0.0, %v979
        %v981 = vpop.f32.mrb[0].mxu0
        %982 = vdwg.mxu0
        %s983 = sld [smem:[#allocation3]]
        %v984 = vstv %s983
        %v985 = vmul.f32 %v984, %v975
        %v986 = vmul.f32 %v984, %v980
        %v987 = vadd.f32 %v985, %v447
        %v988 = vadd.f32 %v986, %v448
        %989 = vst [vmem:[%s228] sm:$0xff] %v987
        %990 = vst [vmem:[%s228 + $0x8] sm:$0xff] %v988
        %s991 = sand.u32 %s149, 1
        %s992 = sand.u32 %s149, 1
        %s993 = smul.addr %s992, 16
        %s994 = scalar_lea.vmem [#allocation4], %s993
        // Predicated region
        $region45: #{attention_pallas.1} parent=39 // pred_check
          %p995 = pneg %p159
        $region46: #{attention_pallas.1} parent=39 // pred_check_branch
          %997 = sbr.rel (%p995) target = $region48
        $region47: #{attention_pallas.1} parent=39 // pred_region
          %s998 = smul.addr %s21, 4
          %s999 = sadd.s32 %s22, %s998
          %s1000 = smul.addr %s999, 8
          %s1001 = scalar_lea.vmem %s5, %s1000
          // Predicated region
          $region49: #{attention_pallas.1} parent=47 // pred_check
            _
          $region50: #{attention_pallas.1} parent=47 // pred_check_branch
            %1003 = sbr.rel (0) target = $region52
          $region51: #{attention_pallas.1} parent=47 // pred_region
            // Predicated region
            $region53: #{attention_pallas.1} parent=51 // pred_check
              _
            $region54: #{attention_pallas.1} parent=51 // pred_check_branch
              %1005 = sbr.rel (0) target = $region56
            $region55: #{attention_pallas.1} parent=51 // pred_region
              // Predicated region
              $region68: #{attention_pallas.1} parent=55 // pred_check
                _
              $region69: #{attention_pallas.1} parent=55 // pred_check_branch
                %1022 = sbr.rel (0) target = $region71
              $region70: #{attention_pallas.1} parent=55 // pred_region
                loop: start=0, step=1, limit=1
                $region72: #{attention_pallas.1} parent=70 // loop_pre_header
                  _
                $region73: #{attention_pallas.1} parent=70 // loop_header
                  %s1024 = sphi 0, %s1028
                  %p1025 = scmp.ge.s32.totalorder %s1024, 1
                  %s1029 = sphi %s994, %s994
                  %s1030 = sphi %s1001, %s1001
                $region74: #{attention_pallas.1} parent=70 // loop_header_branch
                  %1027 = sbr.rel (%p1025) target = $region78
                $region75: #{attention_pallas.1} parent=70 // loop_body
                  %v1031 = vld [vmem:[%s1029] sm:$0xff]
                  %1032 = vst [vmem:[%s1030] sm:$0xff] %v1031
                  %v1033 = vld [vmem:[%s1029 + $0x8] sm:$0xff]
                  %1034 = vst [vmem:[%s1030 + $0x10] sm:$0xff] %v1033
                $region76: #{attention_pallas.1} parent=70 // loop_footer
                  %s1028 = sadd.s32 1, %s1024
                $region77: #{attention_pallas.1} parent=70 // loop_footer_branch
                  %1023 = sbr.rel target = $region73
                $region78: #{attention_pallas.1} parent=70 // loop_exit
                  _
              $region71: #{attention_pallas.1} parent=55 // pred_fallthru
                _
              // Predicated region
              $region79: #{attention_pallas.1} parent=55 // pred_check
                _
              $region80: #{attention_pallas.1} parent=55 // pred_check_branch
                %1036 = sbr.rel target = $region82
              $region81: #{attention_pallas.1} parent=55 // pred_region
                _
              $region82: #{attention_pallas.1} parent=55 // pred_fallthru
                _
            $region56: #{attention_pallas.1} parent=51 // pred_fallthru
              _
            // Predicated region
            $region57: #{attention_pallas.1} parent=51 // pred_check
              _
            $region58: #{attention_pallas.1} parent=51 // pred_check_branch
              %1007 = sbr.rel target = $region60
            $region59: #{attention_pallas.1} parent=51 // pred_region
              loop: start=0, step=1, limit=1
              $region61: #{attention_pallas.1} parent=59 // loop_pre_header
                _
              $region62: #{attention_pallas.1} parent=59 // loop_header
                %s1010 = sphi 0, %s1014
                %p1011 = scmp.ge.s32.totalorder %s1010, 1
                %s1015 = sphi %s994, %s994
                %s1016 = sphi %s1001, %s1001
              $region63: #{attention_pallas.1} parent=59 // loop_header_branch
                %1013 = sbr.rel (%p1011) target = $region67
              $region64: #{attention_pallas.1} parent=59 // loop_body
                %v1017 = vld [vmem:[%s1015] sm:$0xff]
                %1018 = vst [vmem:[%s1016] sm:$0xff] %v1017
                %v1019 = vld [vmem:[%s1015 + $0x8] sm:$0xff]
                %1020 = vst [vmem:[%s1016 + $0x10] sm:$0xff] %v1019
              $region65: #{attention_pallas.1} parent=59 // loop_footer
                %s1014 = sadd.s32 1, %s1010
              $region66: #{attention_pallas.1} parent=59 // loop_footer_branch
                %1009 = sbr.rel target = $region62
              $region67: #{attention_pallas.1} parent=59 // loop_exit
                _
            $region60: #{attention_pallas.1} parent=51 // pred_fallthru
              _
          $region52: #{attention_pallas.1} parent=47 // pred_fallthru
            _
          %1037 = vnop
        $region48: #{attention_pallas.1} parent=39 // pred_fallthru
          _
      $region40: #{attention_pallas.1} parent=5 // pred_fallthru
        _
      %p1038 = scmp.le.s32.totalorder 2, %s12
      // Predicated region
      $region83: #{attention_pallas.1} parent=5 // pred_check
        %p1039 = pneg %p1038
      $region84: #{attention_pallas.1} parent=5 // pred_check_branch
        %1041 = sbr.rel (%p1039) target = $region86
      $region85: #{attention_pallas.1} parent=5 // pred_region
        %s1042 = ssub.s32 %s12, 2
        // Predicated region
        $region87: #{attention_pallas.1} parent=85 // pred_check
          %p1043 = pneg %p165
        $region88: #{attention_pallas.1} parent=85 // pred_check_branch
          %1045 = sbr.rel (%p1043) target = $region90
        $region89: #{attention_pallas.1} parent=85 // pred_region
          %s1046 = sand.u32 %s150, 1
          %s1047 = sand.u32 %s150, 1
          %s1048 = smul.addr %s1047, 16
          %s1049 = scalar_lea.vmem [#allocation4], %s1048
        $region90: #{attention_pallas.1} parent=85 // pred_fallthru
          _
      $region86: #{attention_pallas.1} parent=5 // pred_fallthru
        _
    $region6: #{attention_pallas.1} parent=1 // loop_footer
      %s16 = sadd.s32 1, %s12
    $region7: #{attention_pallas.1} parent=1 // loop_footer_branch
      %11 = sbr.rel target = $region3
    $region8: #{attention_pallas.1} parent=1 // loop_exit
      _

</llo_original>
